<compile_context>
chip_gen: v5e
topology: v5e:2x2
jax: 0.10.0
libtpu: 0.0.40
codegen_flags: <defaults>
</compile_context>

<pallas_src>
import math
import functools

import jax
import jax.numpy as jnp
from jax.experimental import pallas as pl
from jax.experimental.pallas import tpu as pltpu


def make_positional_encoding_buffer(d_model, max_len=5000, dtype=jnp.float32):
    """Same construction as the PyTorch __init__ (deterministic, no checkpoint)."""
    position = jnp.arange(0, max_len, dtype=jnp.float32)[:, None]              # [L,1]
    div_term = jnp.exp(jnp.arange(0, d_model, 2, dtype=jnp.float32)
                       * (-math.log(10000.0) / d_model))                        # [D/2]
    pe = jnp.zeros((max_len, d_model), dtype=jnp.float32)
    pe = pe.at[:, 0::2].set(jnp.sin(position * div_term))
    pe = pe.at[:, 1::2].set(jnp.cos(position * div_term))
    return pe[:, None, :].astype(dtype)                                         # [L,1,D]


def _pe_add_kernel(x_ref, pe_ref, o_ref):
    """Eval path: y = x + pe (pe broadcasts over the batch/sublane axis)."""
    x = x_ref[...].astype(jnp.float32)          # [tS, B, D]
    pe = pe_ref[...].astype(jnp.float32)        # [tS, 1, D]
    o_ref[...] = (x + pe).astype(o_ref.dtype)


def _pe_add_dropout_kernel(x_ref, pe_ref, bits_ref, o_ref, *, keep_thresh, scale):
    """Train path: y = dropout(x + pe) via integer-threshold compare on uint32 bits."""
    x = x_ref[...].astype(jnp.float32)          # compute in f32, cast once at store
    pe = pe_ref[...].astype(jnp.float32)
    y = x + pe
    keep = bits_ref[...] >= jnp.uint32(keep_thresh)         # P(keep) = 1 - p
    y = jnp.where(keep, y * jnp.float32(scale), jnp.float32(0.0))
    o_ref[...] = y.astype(o_ref.dtype)


def _choose_tile_s(S, B, D, itemsize, target_bytes=2 << 20):
    """Pick a sequence tile so one x block is ~2 MiB (fits v7x VMEM with headroom)."""
    rows_per_tile = max(1, target_bytes // max(1, B * D * itemsize))
    return int(min(S, rows_per_tile))


def positional_encoding_forward(x, pe, *, p=0.5, training=True,
                                dropout_key=None, tile_s=None):
    """x: [S, B, D].  pe: [max_len, 1, D].  Returns dropout(x + pe[:S])."""
    S, B, D = x.shape
    assert pe.shape[0] >= S and pe.shape[2] == D

    if tile_s is None:
        tile_s = _choose_tile_s(S, B, D, x.dtype.itemsize)
    grid = (pl.cdiv(S, tile_s),)

    # Last two block dims equal the full array dims -> (8,128) rule satisfied.
    xy_spec = pl.BlockSpec((tile_s, B, D), lambda i: (i, 0, 0))
    pe_spec = pl.BlockSpec((tile_s, 1, D), lambda i: (i, 0, 0))  # windows into full pe

    compiler_params = pltpu.CompilerParams(
        dimension_semantics=("parallel",),        # megacore-shardable on v7x
        vmem_limit_bytes=32 * 1024 * 1024,
    )
    out_shape = jax.ShapeDtypeStruct((S, B, D), x.dtype)

    use_dropout = training and p > 0.0
    if not use_dropout:
        return pl.pallas_call(
            _pe_add_kernel,
            out_shape=out_shape,
            grid=grid,
            in_specs=[xy_spec, pe_spec],
            out_specs=xy_spec,
            compiler_params=compiler_params,
        )(x, pe)

    if dropout_key is None:
        raise ValueError("dropout_key is required when training with p > 0")
    bits = jax.random.bits(dropout_key, (S, B, D), dtype=jnp.uint32)
    keep_thresh = min(int(p * (1 << 32)), (1 << 32) - 1)
    scale = 1.0 / (1.0 - p)
    kernel = functools.partial(_pe_add_dropout_kernel,
                               keep_thresh=keep_thresh, scale=scale)
    return pl.pallas_call(
        kernel,
        out_shape=out_shape,
        grid=grid,
        in_specs=[xy_spec, pe_spec, xy_spec],     # bits tiled identically to x
        out_specs=xy_spec,
        compiler_params=compiler_params,
    )(x, pe, bits)


if __name__ == "__main__":
    # Small shapes consistent with the module: [seq, batch, d_model]
    S, B, D = 8, 2, 32
    p = 0.5

    root = jax.random.PRNGKey(0)
    x_key, drop_key = jax.random.split(root)
    x = jax.random.normal(x_key, (S, B, D), dtype=jnp.float32)
    pe = make_positional_encoding_buffer(D, max_len=5000)

    # Eval-mode path (dropout = identity): check against pure-JAX reference.
    y_eval = jax.block_until_ready(
        positional_encoding_forward(x, pe, p=p, training=False))
    ref_eval = x + pe[:S]
    assert jnp.allclose(y_eval, ref_eval, atol=1e-6), "eval-mode mismatch"

    # Train-mode path (inverted dropout, deterministic bits -> exact reference).
    y_train = jax.block_until_ready(
        positional_encoding_forward(x, pe, p=p, training=True,
                                    dropout_key=drop_key))
    bits = jax.random.bits(drop_key, (S, B, D), dtype=jnp.uint32)
    keep = bits >= jnp.uint32(min(int(p * (1 << 32)), (1 << 32) - 1))
    ref_train = jnp.where(keep, (x + pe[:S]) * (1.0 / (1.0 - p)), 0.0)
    assert y_train.shape == (S, B, D)
    assert jnp.allclose(y_train, ref_train, atol=1e-6), "train-mode mismatch"

    print("KERNEL_OK")
</pallas_src>

<mosaic_0001>
module attributes {stable_mosaic.version = 11 : i64} {
  func.func @_pe_add_kernel(%arg0: i32, %arg1: memref<8x2x32xf32, #tpu.memory_space<vmem>>, %arg2: memref<8x1x32xf32, #tpu.memory_space<vmem>>, %arg3: memref<8x2x32xf32, #tpu.memory_space<vmem>>) attributes {dimension_semantics = [#tpu.dimension_semantics<parallel>], iteration_bounds = array<i64: 1>, scalar_prefetch = 0 : i64, scratch_operands = 0 : i64, tpu.core_type = #tpu.core_type<tc>, window_params = [{transform_indices = @transform_0, window_bounds = array<i64: 8, 2, 32>}, {transform_indices = @transform_1, window_bounds = array<i64: 8, 1, 32>}, {transform_indices = @transform_2, window_bounds = array<i64: 8, 2, 32>}]} {
    %c0 = arith.constant 0 : index
    %c0_0 = arith.constant 0 : index
    %c0_1 = arith.constant 0 : index
    %0 = vector.load %arg1[%c0, %c0_0, %c0_1] : memref<8x2x32xf32, #tpu.memory_space<vmem>>, vector<8x2x32xf32>
    %c0_2 = arith.constant 0 : index
    %c0_3 = arith.constant 0 : index
    %c0_4 = arith.constant 0 : index
    %1 = vector.load %arg2[%c0_2, %c0_3, %c0_4] : memref<8x1x32xf32, #tpu.memory_space<vmem>>, vector<8x1x32xf32>
    %2 = vector.broadcast %1 : vector<8x1x32xf32> to vector<8x2x32xf32>
    %3 = arith.addf %0, %2 : vector<8x2x32xf32>
    %c0_5 = arith.constant 0 : index
    %c0_6 = arith.constant 0 : index
    %c0_7 = arith.constant 0 : index
    %4 = vector.load %arg3[%c0_5, %c0_6, %c0_7] : memref<8x2x32xf32, #tpu.memory_space<vmem>>, vector<8x2x32xf32>
    tpu.vector_store %arg3[%c0_5, %c0_6, %c0_7], %3 {strides = array<i32>} : memref<8x2x32xf32, #tpu.memory_space<vmem>>, vector<8x2x32xf32>,
    return
  }
  func.func @transform_0(%arg0: i32) -> (i32, i32, i32) {
    %c0_i32 = arith.constant 0 : i32
    %c0_i32_0 = arith.constant 0 : i32
    %c0_i32_1 = arith.constant 0 : i32
    return %arg0, %c0_i32, %c0_i32_0 : i32, i32, i32
  }
  func.func @transform_1(%arg0: i32) -> (i32, i32, i32) {
    %c0_i32 = arith.constant 0 : i32
    %c0_i32_0 = arith.constant 0 : i32
    %c0_i32_1 = arith.constant 0 : i32
    return %arg0, %c0_i32, %c0_i32_0 : i32, i32, i32
  }
  func.func @transform_2(%arg0: i32) -> (i32, i32, i32) {
    %c0_i32 = arith.constant 0 : i32
    %c0_i32_0 = arith.constant 0 : i32
    %c0_i32_1 = arith.constant 0 : i32
    return %arg0, %c0_i32, %c0_i32_0 : i32, i32, i32
  }
}

</mosaic_0001>

<llo_original>
// kernel: tpu_custom_call.1
$region0: #{tpu_custom_call.1}
  #allocation0 [shape = 'u32[]', space=smem, size = 0x4, offset = 0x4, fixed_abs, tag = 'smem constant byte address 0x4 - core index']
  #allocation1 [shape = 'u32[72,128]{1,0:T(1,128)}', space=vmem, size = 0x9000, scoped, tag = 'internal scratch']
  %s0 = inlined_call_operand.vmem [shape: f32[8,2,32], index: 0, kind: input, shape index: {}]
  %s1 = inlined_call_operand.vmem [shape: f32[5000,1,32], index: 1, kind: input, shape index: {}]
  %s2 = inlined_call_operand.hbm [shape: f32[8,2,32], index: 2, kind: output, shape index: {}]
  %s3 = sld [smem:[#allocation0]]
  $region18: #{tpu_custom_call.1} parent=0
    _
  %s5 = ssub.s32 1, %s3
  %s6 = scalar_select 0, %s5, %s3
  $region1: #{tpu_custom_call.1} parent=0
    #allocation2 [shape = 'u8[8192]{0}', space=vmem, size = 0x2000, scoped, tag = 'output window, operand 0, single buffered']
    #allocation3 [shape = 's32[1]{0}', space=sflag, size = 0x4, scoped, tag = 'scoped memory for tpu_custom_call.1']
    %7 = vsyncpa [#allocation3], 0
    // Predicated region
    $region2: #{tpu_custom_call.1} parent=1 // pred_check
      _
    $region3: #{tpu_custom_call.1} parent=1 // pred_check_branch
      %9 = sbr.rel (0) target = $region5
    $region4: #{tpu_custom_call.1} parent=1 // pred_region
      _
    $region5: #{tpu_custom_call.1} parent=1 // pred_fallthru
      _
    // Predicated region
    $region6: #{tpu_custom_call.1} parent=1 // pred_check
      _
    $region7: #{tpu_custom_call.1} parent=1 // pred_check_branch
      %11 = sbr.rel (0) target = $region9
    $region8: #{tpu_custom_call.1} parent=1 // pred_region
      _
    $region9: #{tpu_custom_call.1} parent=1 // pred_fallthru
      _
    %v12 = vld [vmem:[%s0] sm:$0x3]
    %v13 = vld [vmem:[%s0 + $0x2] sm:$0x3]
    %v14 = vld [vmem:[%s0 + $0x4] sm:$0x3]
    %v15 = vld [vmem:[%s0 + $0x6] sm:$0x3]
    %v16 = vld [vmem:[%s0 + $0x8] sm:$0x3]
    %v17 = vld [vmem:[%s0 + $0xa] sm:$0x3]
    %v18 = vld [vmem:[%s0 + $0xc] sm:$0x3]
    %v19 = vld [vmem:[%s0 + $0xe] sm:$0x3]
    %v20 = vld [vmem:[%s1] sm:$0x1]
    %v21 = vld [vmem:[%s1 + $0x1] sm:$0x1]
    %v22 = vld [vmem:[%s1 + $0x2] sm:$0x1]
    %v23 = vld [vmem:[%s1 + $0x3] sm:$0x1]
    %v24 = vld [vmem:[%s1 + $0x4] sm:$0x1]
    %v25 = vld [vmem:[%s1 + $0x5] sm:$0x1]
    %v26 = vld [vmem:[%s1 + $0x6] sm:$0x1]
    %v27 = vld [vmem:[%s1 + $0x7] sm:$0x1]
    %v36 = vperm.slane %v20, 0
    %v37 = vperm.slane %v21, 0
    %v38 = vperm.slane %v22, 0
    %v39 = vperm.slane %v23, 0
    %v40 = vperm.slane %v24, 0
    %v41 = vperm.slane %v25, 0
    %v42 = vperm.slane %v26, 0
    %v43 = vperm.slane %v27, 0
    %v52 = vadd.f32 %v12, %v36
    %v53 = vadd.f32 %v13, %v37
    %v54 = vadd.f32 %v14, %v38
    %v55 = vadd.f32 %v15, %v39
    %v56 = vadd.f32 %v16, %v40
    %v57 = vadd.f32 %v17, %v41
    %v58 = vadd.f32 %v18, %v42
    %v59 = vadd.f32 %v19, %v43
    %vm60 = vcmask 254976
    %61 = vst.msk [vmem:[#allocation2] sm:$0x3] %vm60, %v52
    %62 = vst.msk [vmem:[#allocation2 + $0x2] sm:$0x3] %vm60, %v53
    %63 = vst.msk [vmem:[#allocation2 + $0x4] sm:$0x3] %vm60, %v54
    %64 = vst.msk [vmem:[#allocation2 + $0x6] sm:$0x3] %vm60, %v55
    %65 = vst.msk [vmem:[#allocation2 + $0x8] sm:$0x3] %vm60, %v56
    %66 = vst.msk [vmem:[#allocation2 + $0xa] sm:$0x3] %vm60, %v57
    %67 = vst.msk [vmem:[#allocation2 + $0xc] sm:$0x3] %vm60, %v58
    %68 = vst.msk [vmem:[#allocation2 + $0xe] sm:$0x3] %vm60, %v59
    // Predicated region
    $region10: #{tpu_custom_call.1} parent=1 // pred_check
      _
    $region11: #{tpu_custom_call.1} parent=1 // pred_check_branch
      %70 = sbr.rel (0) target = $region13
    $region12: #{tpu_custom_call.1} parent=1 // pred_region
      %72 = vsyncadd [#allocation3], 0
      %s73 = sshll.u32 [#allocation2], 4
      %s74 = int_to_ptr.vmem [resolvable:$true] %s73
      %s75 = sshll.u32 %s2, 4
      %s76 = int_to_ptr.hbm [resolvable:$true] %s75
      %81 = dma.vmem_to_hbm [thread:$0]  %s74, 256, %s76, [#allocation3], 32, 32, 2
    $region13: #{tpu_custom_call.1} parent=1 // pred_fallthru
      _
    // Predicated region
    $region14: #{tpu_custom_call.1} parent=1 // pred_check
      _
    $region15: #{tpu_custom_call.1} parent=1 // pred_check_branch
      %83 = sbr.rel (0) target = $region17
    $region16: #{tpu_custom_call.1} parent=1 // pred_region
      %85 = dma.done [#allocation3], 256
    $region17: #{tpu_custom_call.1} parent=1 // pred_fallthru
      _
    %86 = vsyncpa [#allocation3], 1

</llo_original>
